<compile_context>
chip_gen: v7x
topology: tpu7x:2x2x1
jax: 0.10.0
libtpu: 0.0.40
codegen_flags: <defaults>
</compile_context>

<pallas_src>
import jax
import jax.numpy as jnp
from jax.experimental import pallas as pl
from jax.experimental.pallas import tpu as pltpu

KSIZE = 7
PAD = 3


def lka_kernel(x_ref, w_ref, b_ref, o_ref, xp_ref):
    """One row-tile grid step.

    x_ref : (H, B*C*W)            unpadded activations, lane = (b, ci, w)
    w_ref : (7, B*C*W, B*Cout*W)  banded weights (width reflection folded in)
    b_ref : (1, B*Cout*W)         bias broadcast over (b, wo), f32
    o_ref : (TH, B*Cout*W)        output row tile
    xp_ref: (H+6, B*C*W)          scratch: height-reflection padded activations
    """
    H = x_ref.shape[0]
    th = o_ref.shape[0]

    # In-kernel halo synthesis for ReflectionPad2d(3) along H (edge excluded).
    xp_ref[pl.ds(PAD, H), :] = x_ref[...]
    for p in range(PAD):                                   # static row copies
        xp_ref[pl.ds(p, 1), :] = x_ref[pl.ds(PAD - p, 1), :]           # 3,2,1
        xp_ref[pl.ds(PAD + H + p, 1), :] = x_ref[pl.ds(H - 2 - p, 1), :]  # H-2..H-4

    row0 = pl.multiple_of(pl.program_id(0) * th, th)

    # 7 back-to-back MXU accumulations (K = N = B*C*W), f32 accumulation.
    acc = jnp.zeros(o_ref.shape, jnp.float32)
    for kh in range(KSIZE):
        acc = acc + jnp.dot(xp_ref[pl.ds(row0 + kh, th), :], w_ref[kh],
                            preferred_element_type=jnp.float32)
    o_ref[...] = (acc + b_ref[...]).astype(o_ref.dtype)


def _build_banded_weight(weight_oihw, B, W):
    """(Cout, Cin, 7, 7) -> (7, B*Cin*W, B*Cout*W), folding the W reflection.

    band[kh, b'*Cin*W + ci*W + w, b*Cout*W + co*W + wo]
        = delta(b', b) * sum_{kw : reflectW(wo + kw) == w} weight[co, ci, kh, kw]
    """
    Cout, Cin, K, _ = weight_oihw.shape
    Wp = W + 2 * PAD
    wp = jnp.arange(Wp)
    s = wp - PAD
    src_w = jnp.where(s < 0, -s, jnp.where(s >= W, 2 * (W - 1) - s, s))  # (Wp,)
    kw_idx = jnp.arange(K)[:, None]                    # (K, 1)
    wo_idx = jnp.arange(W)[None, :]                    # (1, W)
    src = src_w[kw_idx + wo_idx]                       # (K, W): source col of (wo+kw)
    sel = (src[:, :, None] == jnp.arange(W)[None, None, :]).astype(jnp.float32)  # (K, W, W)

    w_t = jnp.transpose(weight_oihw, (2, 3, 1, 0)).astype(jnp.float32)  # (kh, kw, ci, co)
    # band_blk[kh, ci, w, co, wo] = sum_kw w_t[kh, kw, ci, co] * sel[kw, wo, w]
    band_blk = jnp.einsum('kqic,qow->kiwco', w_t, sel)
    band_blk = band_blk.reshape(K, Cin * W, Cout * W)

    eye = jnp.eye(B, dtype=jnp.float32)                # block-diagonal over batch
    band = jnp.einsum('ab,kmn->kambn', eye, band_blk)
    return band.reshape(K, B * Cin * W, B * Cout * W)


def lka_forward(x_nchw, weight_oihw, bias, *, compute_dtype=jnp.bfloat16, row_tile=8):
    """x_nchw: (B, C, H, W); weight_oihw: (Cout, Cin, 7, 7); bias: (Cout,)."""
    B, C, H, W = x_nchw.shape
    Cout, Cin, KH, KW = weight_oihw.shape
    assert (Cin, KH, KW) == (C, KSIZE, KSIZE) and Cout == C
    assert H >= PAD + 1 and W >= PAD + 1, "ReflectionPad2d(3) needs H, W >= 4"

    th = row_tile if (row_tile is not None and H % row_tile == 0) else H
    assert H % th == 0

    lanes_in = B * C * W
    lanes_out = B * Cout * W
    Hp = H + 2 * PAD

    # Layout glue kept in XLA: only H moves to the front; W stays the minor dim.
    x2d = jnp.transpose(x_nchw, (2, 0, 1, 3)).reshape(H, lanes_in)
    x2d = x2d.astype(compute_dtype)                    # cast hoisted out of the kernel

    wband = _build_banded_weight(weight_oihw, B, W).astype(compute_dtype)
    bias2d = jnp.broadcast_to(bias.astype(jnp.float32)[None, :, None],
                              (B, Cout, W)).reshape(1, lanes_out)

    grid = (H // th,)

    out2d = pl.pallas_call(
        lka_kernel,
        out_shape=jax.ShapeDtypeStruct((H, lanes_out), x_nchw.dtype),
        grid_spec=pltpu.PrefetchScalarGridSpec(
            num_scalar_prefetch=0,
            grid=grid,
            in_specs=[
                # Activations / weights / bias: constant block index -> DMA'd once,
                # resident across the whole grid.
                pl.BlockSpec((H, lanes_in), lambda t: (0, 0)),
                pl.BlockSpec((KSIZE, lanes_in, lanes_out), lambda t: (0, 0, 0)),
                pl.BlockSpec((1, lanes_out), lambda t: (0, 0)),
            ],
            out_specs=pl.BlockSpec((th, lanes_out), lambda t: (t, 0)),
            scratch_shapes=[pltpu.VMEM((Hp, lanes_in), compute_dtype)],
        ),
        compiler_params=pltpu.CompilerParams(
            dimension_semantics=("parallel",)),   # v7x: one row tile per TensorCore
    )(x2d, wband, bias2d)

    out = out2d.reshape(H, B, Cout, W)
    return jnp.transpose(out, (1, 2, 0, 3))


def _reference(x_nchw, weight_oihw, bias):
    # Pure-JAX reference: reflection pad + valid 7x7 conv in NCHW.
    xp = jnp.pad(x_nchw, ((0, 0), (0, 0), (PAD, PAD), (PAD, PAD)), mode="reflect")
    out = jax.lax.conv_general_dilated(
        xp, weight_oihw, window_strides=(1, 1), padding="VALID",
        dimension_numbers=("NCHW", "OIHW", "NCHW"))
    return out + bias[None, :, None, None]


if __name__ == "__main__":
    B, C, H, W = 2, 4, 16, 16

    key = jax.random.PRNGKey(0)
    kx, kw, kb = jax.random.split(key, 3)

    x = jax.random.normal(kx, (B, C, H, W), dtype=jnp.float32)
    # Deterministic init mimicking PyTorch Conv2d default (+/- 1/sqrt(fan_in)).
    fan_in = C * KSIZE * KSIZE
    bound = 1.0 / (fan_in ** 0.5)
    weight = jax.random.uniform(kw, (C, C, KSIZE, KSIZE),
                                minval=-bound, maxval=bound, dtype=jnp.float32)
    bias = jax.random.uniform(kb, (C,), minval=-bound, maxval=bound,
                              dtype=jnp.float32)

    ref = jax.block_until_ready(_reference(x, weight, bias))

    # f32 MXU path: exact check.
    out_f32 = jax.block_until_ready(
        lka_forward(x, weight, bias, compute_dtype=jnp.float32))
    assert out_f32.shape == (B, C, H, W)
    assert jnp.allclose(out_f32, ref, atol=1e-4, rtol=1e-4)

    # Default path: bf16 MXU inputs, f32 accumulation.
    out = jax.block_until_ready(lka_forward(x, weight, bias))
    assert out.shape == (B, C, H, W)
    assert jnp.allclose(out, ref, atol=5e-2, rtol=5e-2)

    print("KERNEL_OK")
</pallas_src>

<mosaic_0001>
module attributes {stable_mosaic.version = 11 : i64} {
  func.func @lka_kernel(%arg0: i32, %arg1: memref<16x128xf32, #tpu.memory_space<vmem>>, %arg2: memref<7x128x128xf32, #tpu.memory_space<vmem>>, %arg3: memref<1x128xf32, #tpu.memory_space<vmem>>, %arg4: memref<8x128xf32, #tpu.memory_space<vmem>>, %arg5: memref<22x128xf32, #tpu.memory_space<vmem>>) attributes {dimension_semantics = [#tpu.dimension_semantics<parallel>], iteration_bounds = array<i64: 2>, scalar_prefetch = 0 : i64, scratch_operands = 1 : i64, tpu.core_type = #tpu.core_type<tc>, window_params = [{pipeline_mode = #tpu.pipeline_mode<synchronous>, transform_indices = @transform_0, window_bounds = array<i64: 16, 128>}, {pipeline_mode = #tpu.pipeline_mode<synchronous>, transform_indices = @transform_1, window_bounds = array<i64: 7, 128, 128>}, {pipeline_mode = #tpu.pipeline_mode<synchronous>, transform_indices = @transform_2, window_bounds = array<i64: 1, 128>}, {transform_indices = @transform_3, window_bounds = array<i64: 8, 128>}]} {
    %c0 = arith.constant 0 : index
    %c0_0 = arith.constant 0 : index
    %0 = vector.load %arg1[%c0, %c0_0] : memref<16x128xf32, #tpu.memory_space<vmem>>, vector<16x128xf32>
    %c3 = arith.constant 3 : index
    %c0_1 = arith.constant 0 : index
    %1 = vector.load %arg5[%c3, %c0_1] : memref<22x128xf32, #tpu.memory_space<vmem>>, vector<16x128xf32>
    tpu.vector_store %arg5[%c3, %c0_1], %0 {strides = array<i32>} : memref<22x128xf32, #tpu.memory_space<vmem>>, vector<16x128xf32>,
    %c3_2 = arith.constant 3 : index
    %c0_3 = arith.constant 0 : index
    %2 = vector.load %arg1[%c3_2, %c0_3] : memref<16x128xf32, #tpu.memory_space<vmem>>, vector<1x128xf32>
    %c0_4 = arith.constant 0 : index
    %c0_5 = arith.constant 0 : index
    %3 = vector.load %arg5[%c0_4, %c0_5] : memref<22x128xf32, #tpu.memory_space<vmem>>, vector<1x128xf32>
    tpu.vector_store %arg5[%c0_4, %c0_5], %2 {strides = array<i32>} : memref<22x128xf32, #tpu.memory_space<vmem>>, vector<1x128xf32>,
    %c14 = arith.constant 14 : index
    %c0_6 = arith.constant 0 : index
    %4 = vector.load %arg1[%c14, %c0_6] : memref<16x128xf32, #tpu.memory_space<vmem>>, vector<1x128xf32>
    %c19 = arith.constant 19 : index
    %c0_7 = arith.constant 0 : index
    %5 = vector.load %arg5[%c19, %c0_7] : memref<22x128xf32, #tpu.memory_space<vmem>>, vector<1x128xf32>
    tpu.vector_store %arg5[%c19, %c0_7], %4 {strides = array<i32>} : memref<22x128xf32, #tpu.memory_space<vmem>>, vector<1x128xf32>,
    %c2 = arith.constant 2 : index
    %c0_8 = arith.constant 0 : index
    %6 = vector.load %arg1[%c2, %c0_8] : memref<16x128xf32, #tpu.memory_space<vmem>>, vector<1x128xf32>
    %c1 = arith.constant 1 : index
    %c0_9 = arith.constant 0 : index
    %7 = vector.load %arg5[%c1, %c0_9] : memref<22x128xf32, #tpu.memory_space<vmem>>, vector<1x128xf32>
    tpu.vector_store %arg5[%c1, %c0_9], %6 {strides = array<i32>} : memref<22x128xf32, #tpu.memory_space<vmem>>, vector<1x128xf32>,
    %c13 = arith.constant 13 : index
    %c0_10 = arith.constant 0 : index
    %8 = vector.load %arg1[%c13, %c0_10] : memref<16x128xf32, #tpu.memory_space<vmem>>, vector<1x128xf32>
    %c20 = arith.constant 20 : index
    %c0_11 = arith.constant 0 : index
    %9 = vector.load %arg5[%c20, %c0_11] : memref<22x128xf32, #tpu.memory_space<vmem>>, vector<1x128xf32>
    tpu.vector_store %arg5[%c20, %c0_11], %8 {strides = array<i32>} : memref<22x128xf32, #tpu.memory_space<vmem>>, vector<1x128xf32>,
    %c1_12 = arith.constant 1 : index
    %c0_13 = arith.constant 0 : index
    %10 = vector.load %arg1[%c1_12, %c0_13] : memref<16x128xf32, #tpu.memory_space<vmem>>, vector<1x128xf32>
    %c2_14 = arith.constant 2 : index
    %c0_15 = arith.constant 0 : index
    %11 = vector.load %arg5[%c2_14, %c0_15] : memref<22x128xf32, #tpu.memory_space<vmem>>, vector<1x128xf32>
    tpu.vector_store %arg5[%c2_14, %c0_15], %10 {strides = array<i32>} : memref<22x128xf32, #tpu.memory_space<vmem>>, vector<1x128xf32>,
    %c12 = arith.constant 12 : index
    %c0_16 = arith.constant 0 : index
    %12 = vector.load %arg1[%c12, %c0_16] : memref<16x128xf32, #tpu.memory_space<vmem>>, vector<1x128xf32>
    %c21 = arith.constant 21 : index
    %c0_17 = arith.constant 0 : index
    %13 = vector.load %arg5[%c21, %c0_17] : memref<22x128xf32, #tpu.memory_space<vmem>>, vector<1x128xf32>
    tpu.vector_store %arg5[%c21, %c0_17], %12 {strides = array<i32>} : memref<22x128xf32, #tpu.memory_space<vmem>>, vector<1x128xf32>,
    %c8_i32 = arith.constant 8 : i32
    %14 = arith.muli %arg0, %c8_i32 : i32
    %15 = tpu.assume_multiple %14, 8 : i32
    %cst = arith.constant 0.000000e+00 : f32
    %16 = vector.broadcast %cst : f32 to vector<8x128xf32>
    %c0_i32 = arith.constant 0 : i32
    %17 = arith.addi %15, %c0_i32 : i32
    %18 = arith.index_cast %17 : i32 to index
    %c0_18 = arith.constant 0 : index
    %19 = vector.load %arg5[%18, %c0_18] : memref<22x128xf32, #tpu.memory_space<vmem>>, vector<8x128xf32>
    %c0_19 = arith.constant 0 : index
    %c0_20 = arith.constant 0 : index
    %c0_21 = arith.constant 0 : index
    %20 = vector.load %arg2[%c0_19, %c0_20, %c0_21] : memref<7x128x128xf32, #tpu.memory_space<vmem>>, vector<1x128x128xf32>
    %21 = vector.shape_cast %20 : vector<1x128x128xf32> to vector<128x128xf32>
    %cst_22 = arith.constant dense<0.000000e+00> : vector<8x128xf32>
    %22 = tpu.matmul %19, %21, %cst_22 {dimension_numbers = #tpu.dot_dimension_numbers<[1], [0], [0], [1], [0, 0, 1, 1], [], []>} : vector<8x128xf32>, vector<128x128xf32>, vector<8x128xf32> -> vector<8x128xf32>
    %23 = arith.addf %16, %22 : vector<8x128xf32>
    %c1_i32 = arith.constant 1 : i32
    %24 = arith.addi %15, %c1_i32 : i32
    %25 = arith.index_cast %24 : i32 to index
    %c0_23 = arith.constant 0 : index
    %26 = vector.load %arg5[%25, %c0_23] : memref<22x128xf32, #tpu.memory_space<vmem>>, vector<8x128xf32>
    %c1_24 = arith.constant 1 : index
    %c0_25 = arith.constant 0 : index
    %c0_26 = arith.constant 0 : index
    %27 = vector.load %arg2[%c1_24, %c0_25, %c0_26] : memref<7x128x128xf32, #tpu.memory_space<vmem>>, vector<1x128x128xf32>
    %28 = vector.shape_cast %27 : vector<1x128x128xf32> to vector<128x128xf32>
    %cst_27 = arith.constant dense<0.000000e+00> : vector<8x128xf32>
    %29 = tpu.matmul %26, %28, %cst_27 {dimension_numbers = #tpu.dot_dimension_numbers<[1], [0], [0], [1], [0, 0, 1, 1], [], []>} : vector<8x128xf32>, vector<128x128xf32>, vector<8x128xf32> -> vector<8x128xf32>
    %30 = arith.addf %23, %29 : vector<8x128xf32>
    %c2_i32 = arith.constant 2 : i32
    %31 = arith.addi %15, %c2_i32 : i32
    %32 = arith.index_cast %31 : i32 to index
    %c0_28 = arith.constant 0 : index
    %33 = vector.load %arg5[%32, %c0_28] : memref<22x128xf32, #tpu.memory_space<vmem>>, vector<8x128xf32>
    %c2_29 = arith.constant 2 : index
    %c0_30 = arith.constant 0 : index
    %c0_31 = arith.constant 0 : index
    %34 = vector.load %arg2[%c2_29, %c0_30, %c0_31] : memref<7x128x128xf32, #tpu.memory_space<vmem>>, vector<1x128x128xf32>
    %35 = vector.shape_cast %34 : vector<1x128x128xf32> to vector<128x128xf32>
    %cst_32 = arith.constant dense<0.000000e+00> : vector<8x128xf32>
    %36 = tpu.matmul %33, %35, %cst_32 {dimension_numbers = #tpu.dot_dimension_numbers<[1], [0], [0], [1], [0, 0, 1, 1], [], []>} : vector<8x128xf32>, vector<128x128xf32>, vector<8x128xf32> -> vector<8x128xf32>
    %37 = arith.addf %30, %36 : vector<8x128xf32>
    %c3_i32 = arith.constant 3 : i32
    %38 = arith.addi %15, %c3_i32 : i32
    %39 = arith.index_cast %38 : i32 to index
    %c0_33 = arith.constant 0 : index
    %40 = vector.load %arg5[%39, %c0_33] : memref<22x128xf32, #tpu.memory_space<vmem>>, vector<8x128xf32>
    %c3_34 = arith.constant 3 : index
    %c0_35 = arith.constant 0 : index
    %c0_36 = arith.constant 0 : index
    %41 = vector.load %arg2[%c3_34, %c0_35, %c0_36] : memref<7x128x128xf32, #tpu.memory_space<vmem>>, vector<1x128x128xf32>
    %42 = vector.shape_cast %41 : vector<1x128x128xf32> to vector<128x128xf32>
    %cst_37 = arith.constant dense<0.000000e+00> : vector<8x128xf32>
    %43 = tpu.matmul %40, %42, %cst_37 {dimension_numbers = #tpu.dot_dimension_numbers<[1], [0], [0], [1], [0, 0, 1, 1], [], []>} : vector<8x128xf32>, vector<128x128xf32>, vector<8x128xf32> -> vector<8x128xf32>
    %44 = arith.addf %37, %43 : vector<8x128xf32>
    %c4_i32 = arith.constant 4 : i32
    %45 = arith.addi %15, %c4_i32 : i32
    %46 = arith.index_cast %45 : i32 to index
    %c0_38 = arith.constant 0 : index
    %47 = vector.load %arg5[%46, %c0_38] : memref<22x128xf32, #tpu.memory_space<vmem>>, vector<8x128xf32>
    %c4 = arith.constant 4 : index
    %c0_39 = arith.constant 0 : index
    %c0_40 = arith.constant 0 : index
    %48 = vector.load %arg2[%c4, %c0_39, %c0_40] : memref<7x128x128xf32, #tpu.memory_space<vmem>>, vector<1x128x128xf32>
    %49 = vector.shape_cast %48 : vector<1x128x128xf32> to vector<128x128xf32>
    %cst_41 = arith.constant dense<0.000000e+00> : vector<8x128xf32>
    %50 = tpu.matmul %47, %49, %cst_41 {dimension_numbers = #tpu.dot_dimension_numbers<[1], [0], [0], [1], [0, 0, 1, 1], [], []>} : vector<8x128xf32>, vector<128x128xf32>, vector<8x128xf32> -> vector<8x128xf32>
    %51 = arith.addf %44, %50 : vector<8x128xf32>
    %c5_i32 = arith.constant 5 : i32
    %52 = arith.addi %15, %c5_i32 : i32
    %53 = arith.index_cast %52 : i32 to index
    %c0_42 = arith.constant 0 : index
    %54 = vector.load %arg5[%53, %c0_42] : memref<22x128xf32, #tpu.memory_space<vmem>>, vector<8x128xf32>
    %c5 = arith.constant 5 : index
    %c0_43 = arith.constant 0 : index
    %c0_44 = arith.constant 0 : index
    %55 = vector.load %arg2[%c5, %c0_43, %c0_44] : memref<7x128x128xf32, #tpu.memory_space<vmem>>, vector<1x128x128xf32>
    %56 = vector.shape_cast %55 : vector<1x128x128xf32> to vector<128x128xf32>
    %cst_45 = arith.constant dense<0.000000e+00> : vector<8x128xf32>
    %57 = tpu.matmul %54, %56, %cst_45 {dimension_numbers = #tpu.dot_dimension_numbers<[1], [0], [0], [1], [0, 0, 1, 1], [], []>} : vector<8x128xf32>, vector<128x128xf32>, vector<8x128xf32> -> vector<8x128xf32>
    %58 = arith.addf %51, %57 : vector<8x128xf32>
    %c6_i32 = arith.constant 6 : i32
    %59 = arith.addi %15, %c6_i32 : i32
    %60 = arith.index_cast %59 : i32 to index
    %c0_46 = arith.constant 0 : index
    %61 = vector.load %arg5[%60, %c0_46] : memref<22x128xf32, #tpu.memory_space<vmem>>, vector<8x128xf32>
    %c6 = arith.constant 6 : index
    %c0_47 = arith.constant 0 : index
    %c0_48 = arith.constant 0 : index
    %62 = vector.load %arg2[%c6, %c0_47, %c0_48] : memref<7x128x128xf32, #tpu.memory_space<vmem>>, vector<1x128x128xf32>
    %63 = vector.shape_cast %62 : vector<1x128x128xf32> to vector<128x128xf32>
    %cst_49 = arith.constant dense<0.000000e+00> : vector<8x128xf32>
    %64 = tpu.matmul %61, %63, %cst_49 {dimension_numbers = #tpu.dot_dimension_numbers<[1], [0], [0], [1], [0, 0, 1, 1], [], []>} : vector<8x128xf32>, vector<128x128xf32>, vector<8x128xf32> -> vector<8x128xf32>
    %65 = arith.addf %58, %64 : vector<8x128xf32>
    %c0_50 = arith.constant 0 : index
    %c0_51 = arith.constant 0 : index
    %66 = vector.load %arg3[%c0_50, %c0_51] : memref<1x128xf32, #tpu.memory_space<vmem>>, vector<1x128xf32>
    %67 = vector.broadcast %66 : vector<1x128xf32> to vector<8x128xf32>
    %68 = arith.addf %65, %67 : vector<8x128xf32>
    %c0_52 = arith.constant 0 : index
    %c0_53 = arith.constant 0 : index
    %69 = vector.load %arg4[%c0_52, %c0_53] : memref<8x128xf32, #tpu.memory_space<vmem>>, vector<8x128xf32>
    tpu.vector_store %arg4[%c0_52, %c0_53], %68 {strides = array<i32>} : memref<8x128xf32, #tpu.memory_space<vmem>>, vector<8x128xf32>,
    return
  }
  func.func @transform_0(%arg0: i32) -> (i32, i32) {
    %c0_i32 = arith.constant 0 : i32
    %c0_i32_0 = arith.constant 0 : i32
    %c0_i32_1 = arith.constant 0 : i32
    return %c0_i32, %c0_i32_0 : i32, i32
  }
  func.func @transform_1(%arg0: i32) -> (i32, i32, i32) {
    %c0_i32 = arith.constant 0 : i32
    %c0_i32_0 = arith.constant 0 : i32
    %c0_i32_1 = arith.constant 0 : i32
    %c0_i32_2 = arith.constant 0 : i32
    return %c0_i32, %c0_i32_0, %c0_i32_1 : i32, i32, i32
  }
  func.func @transform_2(%arg0: i32) -> (i32, i32) {
    %c0_i32 = arith.constant 0 : i32
    %c0_i32_0 = arith.constant 0 : i32
    %c0_i32_1 = arith.constant 0 : i32
    return %c0_i32, %c0_i32_0 : i32, i32
  }
  func.func @transform_3(%arg0: i32) -> (i32, i32) {
    %c0_i32 = arith.constant 0 : i32
    %c0_i32_0 = arith.constant 0 : i32
    return %arg0, %c0_i32 : i32, i32
  }
}

</mosaic_0001>

<llo_original>
// kernel: tpu_custom_call.1
$region0: #{tpu_custom_call.1}
  #allocation0 [shape = 'u32[]', space=smem, size = 0x4, offset = 0x4, fixed_abs, tag = 'smem constant byte address 0x4 - core index']
  #allocation1 [shape = 'u32[144,128]{1,0:T(1,128)}', space=vmem, size = 0x12000, scoped, tag = 'internal scratch']
  #allocation2 [shape = 'f32[22,128]{1,0:T(8,128)}', space=vmem, size = 0x3000, scoped, tag = 'scratch operand']
  %s0 = inlined_call_operand.hbm [shape: f32[16,128], index: 0, kind: input, shape index: {}]
  %s1 = inlined_call_operand.hbm [shape: f32[7,128,128], index: 1, kind: input, shape index: {}]
  %s2 = inlined_call_operand.vmem [shape: f32[1,128], index: 2, kind: input, shape index: {}]
  %s3 = inlined_call_operand.hbm [shape: f32[16,128], index: 3, kind: output, shape index: {}]
  %s4 = sld [smem:[#allocation0]]
  $region53: #{tpu_custom_call.1} parent=0
    _
  %s6 = ssub.s32 1, %s4
  %s7 = scalar_select 0, %s6, %s4
  $region1: #{tpu_custom_call.1} parent=0
    #allocation3 [shape = 'u8[8192]{0}', space=vmem, size = 0x2000, scoped, tag = 'input window, operand 0, single buffered']
    #allocation4 [shape = 's32[2]{0}', space=sflag, size = 0x8, scoped, tag = 'scoped memory for tpu_custom_call.1']
    #allocation5 [shape = 's32[2]{0}', space=sflag, size = 0x8, scoped, tag = 'scoped memory for tpu_custom_call.1']
    #allocation6 [shape = 'u8[458752]{0}', space=vmem, size = 0x70000, scoped, tag = 'input window, operand 1, single buffered']
    #allocation7 [shape = 's32[1]{0}', space=sflag, size = 0x4, scoped, tag = 'scoped memory for tpu_custom_call.1']
    #allocation8 [shape = 'u8[8192]{0}', space=vmem, size = 0x2000, scoped, tag = 'output window, operand 0']
    %8 = vsyncpa [#allocation4], 0
    %9 = vsyncpa [#allocation7], 0
    %10 = vsyncpa [#allocation5], 0
    %s11 = scalar_lea.sflag [#allocation5], 1
    %12 = vsyncpa %s11, 0
    loop: start=0, step=1, limit=4
    $region2: #{tpu_custom_call.1} parent=1 // loop_pre_header
      _
    $region3: #{tpu_custom_call.1} parent=1 // loop_header
      %s14 = sphi 0, %s18
      %p15 = scmp.ge.s32.totalorder %s14, 4
      %s22 = sphi 0, %s22
      %s24 = sphi 0, %s22
      %s25 = sphi 0, %s24
      %s39 = sphi 0, %s25
      %s43 = sphi 0, %s43
      %s45 = sphi 0, %s43
      %s46 = sphi 0, %s45
      %s60 = sphi 0, %s46
      %s64 = sphi 0, %s64
      %s66 = sphi 0, %s64
      %s67 = sphi 0, %s66
      %s81 = sphi 0, %s67
      %s87 = sphi 0, %s89
      %s90 = sphi 0, %s87
      %s91 = sphi 0, %s90
      %s107 = sphi 0, %s91
    $region4: #{tpu_custom_call.1} parent=1 // loop_header_branch
      %17 = sbr.rel (%p15) target = $region8
    $region5: #{tpu_custom_call.1} parent=1 // loop_body
      %s19 = ssub.s32 %s14, 1
      %s20 = ssub.s32 %s14, 2
      %s21 = sadd.s32 %s14, 1
      %s23 = sadd.s32 %s22, 1
      %p26 = scmp.eq.s32.totalorder %s14, 1
      %p27 = scmp.ne.s32.totalorder %s22, %s24
      %p28 = scmp.eq.s32.totalorder %s14, 0
      %p29 = por %p27, %p28
      %p30 = scmp.ne.s32.totalorder %s22, %s24
      %p31 = scmp.eq.s32.totalorder %s19, 1
      %p32 = por %p30, %p31
      %p33 = scmp.ne.s32.totalorder %s24, %s25
      %p34 = scmp.eq.s32.totalorder %s19, 0
      %p35 = por %p33, %p34
      %p36 = scmp.ne.s32.totalorder %s24, %s25
      %p37 = scmp.eq.s32.totalorder %s20, 1
      %p38 = por %p36, %p37
      %p40 = scmp.ne.s32.totalorder %s25, %s39
      %p41 = scmp.eq.s32.totalorder %s20, 0
      %p42 = por %p40, %p41
      %s44 = sadd.s32 %s43, 1
      %p47 = scmp.eq.s32.totalorder %s14, 1
      %p48 = scmp.ne.s32.totalorder %s43, %s45
      %p49 = scmp.eq.s32.totalorder %s14, 0
      %p50 = por %p48, %p49
      %p51 = scmp.ne.s32.totalorder %s43, %s45
      %p52 = scmp.eq.s32.totalorder %s19, 1
      %p53 = por %p51, %p52
      %p54 = scmp.ne.s32.totalorder %s45, %s46
      %p55 = scmp.eq.s32.totalorder %s19, 0
      %p56 = por %p54, %p55
      %p57 = scmp.ne.s32.totalorder %s45, %s46
      %p58 = scmp.eq.s32.totalorder %s20, 1
      %p59 = por %p57, %p58
      %p61 = scmp.ne.s32.totalorder %s46, %s60
      %p62 = scmp.eq.s32.totalorder %s20, 0
      %p63 = por %p61, %p62
      %s65 = sadd.s32 %s64, 1
      %p68 = scmp.eq.s32.totalorder %s14, 1
      %p69 = scmp.ne.s32.totalorder %s64, %s66
      %p70 = scmp.eq.s32.totalorder %s14, 0
      %p71 = por %p69, %p70
      %p72 = scmp.ne.s32.totalorder %s64, %s66
      %p73 = scmp.eq.s32.totalorder %s19, 1
      %p74 = por %p72, %p73
      %p75 = scmp.ne.s32.totalorder %s66, %s67
      %p76 = scmp.eq.s32.totalorder %s19, 0
      %p77 = por %p75, %p76
      %p78 = scmp.ne.s32.totalorder %s66, %s67
      %p79 = scmp.eq.s32.totalorder %s20, 1
      %p80 = por %p78, %p79
      %p82 = scmp.ne.s32.totalorder %s67, %s81
      %p83 = scmp.eq.s32.totalorder %s20, 0
      %p84 = por %p82, %p83
      %s85 = ssub.s32 %s14, %s21
      %p86 = scmp.eq.s32.totalorder %s85, 0
      %s88 = sadd.s32 %s87, 1
      %s89 = scalar_select %p86, %s87, %s88
      %p92 = pneg %p86
      %p93 = scmp.eq.s32.totalorder %s14, 1
      %p94 = por %p92, %p93
      %p95 = scmp.ne.s32.totalorder %s87, %s90
      %p96 = scmp.eq.s32.totalorder %s14, 0
      %p97 = por %p95, %p96
      %p98 = scmp.ne.s32.totalorder %s87, %s90
      %p99 = scmp.eq.s32.totalorder %s19, 1
      %p100 = por %p98, %p99
      %p101 = scmp.ne.s32.totalorder %s90, %s91
      %p102 = scmp.eq.s32.totalorder %s19, 0
      %p103 = por %p101, %p102
      %p104 = scmp.ne.s32.totalorder %s90, %s91
      %p105 = scmp.eq.s32.totalorder %s20, 1
      %p106 = por %p104, %p105
      %p108 = scmp.ne.s32.totalorder %s91, %s107
      %p109 = scmp.eq.s32.totalorder %s20, 0
      %p110 = por %p108, %p109
      %p111 = scmp.le.s32.totalorder 1, %s14
      %p112 = scmp.lt.s32.totalorder %s14, 3
      %p113 = pnand %p111, %p112
      %p114 = pneg %p113
      // Predicated region
      $region9: #{tpu_custom_call.1} parent=5 // pred_check
        _
      $region10: #{tpu_custom_call.1} parent=5 // pred_check_branch
        %116 = sbr.rel (%p113) target = $region12
      $region11: #{tpu_custom_call.1} parent=5 // pred_region
        %s117 = ssub.s32 %s14, 1
        // Predicated region
        $region13: #{tpu_custom_call.1} parent=11 // pred_check
          %p118 = pneg %p35
        $region14: #{tpu_custom_call.1} parent=11 // pred_check_branch
          %120 = sbr.rel (%p118) target = $region16
        $region15: #{tpu_custom_call.1} parent=11 // pred_region
          %s122 = ssub.s32 256, 256
          %123 = vsyncadd [#allocation4], %s122
          %s124 = sshll.u32 [#allocation3], 4
          %s125 = int_to_ptr.vmem [resolvable:$true] %s124
          %130 = dma.hbm_to_vmem [thread:$0]  %s0, 256, %s125, [#allocation4], 128, 128, 8
        $region16: #{tpu_custom_call.1} parent=11 // pred_fallthru
          _
        // Predicated region
        $region17: #{tpu_custom_call.1} parent=11 // pred_check
          %p131 = pneg %p56
        $region18: #{tpu_custom_call.1} parent=11 // pred_check_branch
          %133 = sbr.rel (%p131) target = $region20
        $region19: #{tpu_custom_call.1} parent=11 // pred_region
          %s135 = ssub.s32 14336, 14336
          %136 = vsyncadd [#allocation7], %s135
          %s137 = sshll.u32 [#allocation6], 4
          %s138 = int_to_ptr.vmem [resolvable:$true] %s137
          %143 = dma.hbm_to_vmem [thread:$0]  %s1, 14336, %s138, [#allocation7], 128, 128, 8
        $region20: #{tpu_custom_call.1} parent=11 // pred_fallthru
          _
        // Predicated region
        $region21: #{tpu_custom_call.1} parent=11 // pred_check
          %p144 = pneg %p77
        $region22: #{tpu_custom_call.1} parent=11 // pred_check_branch
          %146 = sbr.rel (%p144) target = $region24
        $region23: #{tpu_custom_call.1} parent=11 // pred_region
          _
        $region24: #{tpu_custom_call.1} parent=11 // pred_fallthru
          _
      $region12: #{tpu_custom_call.1} parent=5 // pred_fallthru
        _
      %p147 = scmp.lt.s32.totalorder %s14, 2
      // Predicated region
      $region25: #{tpu_custom_call.1} parent=5 // pred_check
        %p148 = pneg %p147
      $region26: #{tpu_custom_call.1} parent=5 // pred_check_branch
        %150 = sbr.rel (%p148) target = $region28
      $region27: #{tpu_custom_call.1} parent=5 // pred_region
        _
      $region28: #{tpu_custom_call.1} parent=5 // pred_fallthru
        _
      %p151 = scmp.le.s32.totalorder 1, %s14
      %p152 = scmp.lt.s32.totalorder %s14, 3
      %p153 = pnand %p151, %p152
      %p154 = pneg %p153
      // Predicated region
      $region29: #{tpu_custom_call.1} parent=5 // pred_check
        _
      $region30: #{tpu_custom_call.1} parent=5 // pred_check_branch
        %156 = sbr.rel (%p153) target = $region32
      $region31: #{tpu_custom_call.1} parent=5 // pred_region
        %s157 = ssub.s32 %s14, 1
        // Predicated region
        $region33: #{tpu_custom_call.1} parent=31 // pred_check
          %p158 = pneg %p35
        $region34: #{tpu_custom_call.1} parent=31 // pred_check_branch
          %160 = sbr.rel (%p158) target = $region36
        $region35: #{tpu_custom_call.1} parent=31 // pred_region
          %161 = dma.done [#allocation4], 256
        $region36: #{tpu_custom_call.1} parent=31 // pred_fallthru
          _
        // Predicated region
        $region37: #{tpu_custom_call.1} parent=31 // pred_check
          %p162 = pneg %p56
        $region38: #{tpu_custom_call.1} parent=31 // pred_check_branch
          %164 = sbr.rel (%p162) target = $region40
        $region39: #{tpu_custom_call.1} parent=31 // pred_region
          %165 = dma.done [#allocation7], 14336
        $region40: #{tpu_custom_call.1} parent=31 // pred_fallthru
          _
        %p166 = pneg %p35
        %p167 = pneg %p32
        %p168 = pneg %p56
        %p169 = pneg %p53
        %p170 = pneg %p77
        %p171 = pneg %p74
        %p172 = pneg %p103
        %p173 = pneg %p100
        %s174 = sand.u32 %s90, 1
        %s175 = scalar_lea.sflag [#allocation5], %s174
        %s176 = sand.u32 %s90, 1
        %s177 = smul.addr %s176, 8
        %s178 = scalar_lea.vmem [#allocation8], %s177
        %v179 = vld [vmem:[#allocation3] sm:$0xff]
        %v180 = vld [vmem:[#allocation3 + $0x8] sm:$0xff]
        %181 = vst [vmem:[#allocation2 + $0x3] sm:$0xff] %v179
        %182 = vst [vmem:[#allocation2 + $0xb] sm:$0xff] %v180
        %v183 = vld [vmem:[#allocation3 + $0x3] sm:$0x1]
        %184 = vst [vmem:[#allocation2] sm:$0x1] %v183
        %v185 = vld [vmem:[#allocation3 + $0xe] sm:$0x1]
        %186 = vst [vmem:[#allocation2 + $0x13] sm:$0x1] %v185
        %v187 = vld [vmem:[#allocation3 + $0x2] sm:$0x1]
        %188 = vst [vmem:[#allocation2 + $0x1] sm:$0x1] %v187
        %v189 = vld [vmem:[#allocation3 + $0xd] sm:$0x1]
        %190 = vst [vmem:[#allocation2 + $0x14] sm:$0x1] %v189
        %v191 = vld [vmem:[#allocation3 + $0x1] sm:$0x1]
        %192 = vst [vmem:[#allocation2 + $0x2] sm:$0x1] %v191
        %v193 = vld [vmem:[#allocation3 + $0xc] sm:$0x1]
        %194 = vst [vmem:[#allocation2 + $0x15] sm:$0x1] %v193
        %s195 = smul.u32 %s19, 8
        %s196 = scalar_lea.vmem [#allocation2], %s195
        %v197 = vld [vmem:[%s196] sm:$0xff]
        %v198 = vld [vmem:[#allocation6] sm:$0xff]
        %v199 = vld [vmem:[#allocation6 + $0x8] sm:$0xff]
        %v200 = vld [vmem:[#allocation6 + $0x10] sm:$0xff]
        %v201 = vld [vmem:[#allocation6 + $0x18] sm:$0xff]
        %v202 = vld [vmem:[#allocation6 + $0x20] sm:$0xff]
        %v203 = vld [vmem:[#allocation6 + $0x28] sm:$0xff]
        %v204 = vld [vmem:[#allocation6 + $0x30] sm:$0xff]
        %v205 = vld [vmem:[#allocation6 + $0x38] sm:$0xff]
        %v206 = vld [vmem:[#allocation6 + $0x40] sm:$0xff]
        %v207 = vld [vmem:[#allocation6 + $0x48] sm:$0xff]
        %v208 = vld [vmem:[#allocation6 + $0x50] sm:$0xff]
        %v209 = vld [vmem:[#allocation6 + $0x58] sm:$0xff]
        %v210 = vld [vmem:[#allocation6 + $0x60] sm:$0xff]
        %v211 = vld [vmem:[#allocation6 + $0x68] sm:$0xff]
        %v212 = vld [vmem:[#allocation6 + $0x70] sm:$0xff]
        %v213 = vld [vmem:[#allocation6 + $0x78] sm:$0xff]
        %s214 = sadd.s32 %s195, 1
        %s215 = scalar_lea.vmem [#allocation2], %s214
        %v216 = vld [vmem:[%s215] sm:$0xff]
        %s217 = scalar_lea.vmem [#allocation6], 128
        %v218 = vld [vmem:[%s217] sm:$0xff]
        %v219 = vld [vmem:[%s217 + $0x8] sm:$0xff]
        %v220 = vld [vmem:[%s217 + $0x10] sm:$0xff]
        %v221 = vld [vmem:[%s217 + $0x18] sm:$0xff]
        %v222 = vld [vmem:[%s217 + $0x20] sm:$0xff]
        %v223 = vld [vmem:[%s217 + $0x28] sm:$0xff]
        %v224 = vld [vmem:[%s217 + $0x30] sm:$0xff]
        %v225 = vld [vmem:[%s217 + $0x38] sm:$0xff]
        %v226 = vld [vmem:[%s217 + $0x40] sm:$0xff]
        %v227 = vld [vmem:[%s217 + $0x48] sm:$0xff]
        %v228 = vld [vmem:[%s217 + $0x50] sm:$0xff]
        %v229 = vld [vmem:[%s217 + $0x58] sm:$0xff]
        %v230 = vld [vmem:[%s217 + $0x60] sm:$0xff]
        %v231 = vld [vmem:[%s217 + $0x68] sm:$0xff]
        %v232 = vld [vmem:[%s217 + $0x70] sm:$0xff]
        %v233 = vld [vmem:[%s217 + $0x78] sm:$0xff]
        %234 = vmatprep.subr.mxu0 0.0
        %235 = vmatpush1.msra.mxu0 %v218
        %236 = vmatprep.subr.mxu0 0.0
        %237 = vmatpush1.msra.mxu0 %v219
        %238 = vmatprep.subr.mxu0 0.0
        %239 = vmatpush1.msra.mxu0 %v220
        %240 = vmatprep.subr.mxu0 0.0
        %241 = vmatpush1.msra.mxu0 %v221
        %242 = vmatprep.subr.mxu0 0.0
        %243 = vmatpush1.msra.mxu0 %v222
        %244 = vmatprep.subr.mxu0 0.0
        %245 = vmatpush1.msra.mxu0 %v223
        %246 = vmatprep.subr.mxu0 0.0
        %247 = vmatpush1.msra.mxu0 %v224
        %248 = vmatprep.subr.mxu0 0.0
        %249 = vmatpush1.msra.mxu0 %v225
        %250 = vmatprep.subr.mxu0 0.0
        %251 = vmatpush1.msra.mxu0 %v226
        %252 = vmatprep.subr.mxu0 0.0
        %253 = vmatpush1.msra.mxu0 %v227
        %254 = vmatprep.subr.mxu0 0.0
        %255 = vmatpush1.msra.mxu0 %v228
        %256 = vmatprep.subr.mxu0 0.0
        %257 = vmatpush1.msra.mxu0 %v229
        %258 = vmatprep.subr.mxu0 0.0
        %259 = vmatpush1.msra.mxu0 %v230
        %260 = vmatprep.subr.mxu0 0.0
        %261 = vmatpush1.msra.mxu0 %v231
        %262 = vmatprep.subr.mxu0 0.0
        %263 = vmatpush1.msra.mxu0 %v232
        %264 = vmatprep.subr.mxu0 0.0
        %265 = vmatpush1.msra.mxu0 %v233
        %266 = vmatprep.subr.mxu0 0.0
        %267 = vmatpush1.msra.mxu0 0.0
        %268 = vmatprep.subr.mxu0 0.0
        %269 = vmatpush1.msra.mxu0 0.0
        %270 = vmatprep.subr.mxu0 0.0
        %271 = vmatpush1.msra.mxu0 0.0
        %272 = vmatprep.subr.mxu0 0.0
        %273 = vmatpush1.msra.mxu0 0.0
        %274 = vmatprep.subr.mxu0 0.0
        %275 = vmatpush1.msra.mxu0 0.0
        %276 = vmatprep.subr.mxu0 0.0
        %277 = vmatpush1.msra.mxu0 0.0
        %278 = vmatprep.subr.mxu0 0.0
        %279 = vmatpush1.msra.mxu0 0.0
        %280 = vmatprep.subr.mxu0 0.0
        %281 = vmatpush1.msra.mxu0 0.0
        %282 = vmatprep.subr.mxu0 0.0
        %283 = vmatpush1.msra.mxu0 0.0
        %284 = vmatprep.subr.mxu0 0.0
        %285 = vmatpush1.msra.mxu0 0.0
        %286 = vmatprep.subr.mxu0 0.0
        %287 = vmatpush1.msra.mxu0 0.0
        %288 = vmatprep.subr.mxu0 0.0
        %289 = vmatpush1.msra.mxu0 0.0
        %290 = vmatprep.subr.mxu0 0.0
        %291 = vmatpush1.msra.mxu0 0.0
        %292 = vmatprep.subr.mxu0 0.0
        %293 = vmatpush1.msra.mxu0 0.0
        %294 = vmatprep.subr.mxu0 0.0
        %295 = vmatpush1.msra.mxu0 0.0
        %296 = vmatprep.subr.mxu0 0.0
        %297 = vmatpush1.msra.mxu0 0.0
        %298 = vmatprep.mubr.f32.mxu0 0.0
        %299 = vmatmul.mubr.f32.gmra.mrb[0].mxu0 %v216
        %v300 = vpop.f32.mrb[0].mxu0
        %v301 = vadd.f32 0.0, %v300
        %v302 = vpop.f32.mrb[0].mxu0
        %303 = vdwg.mxu0
        %304 = vmatprep.subr.mxu0 0.0
        %305 = vmatpush1.msra.mxu0 %v198
        %306 = vmatprep.subr.mxu0 0.0
        %307 = vmatpush1.msra.mxu0 %v199
        %308 = vmatprep.subr.mxu0 0.0
        %309 = vmatpush1.msra.mxu0 %v200
        %310 = vmatprep.subr.mxu0 0.0
        %311 = vmatpush1.msra.mxu0 %v201
        %312 = vmatprep.subr.mxu0 0.0
        %313 = vmatpush1.msra.mxu0 %v202
        %314 = vmatprep.subr.mxu0 0.0
        %315 = vmatpush1.msra.mxu0 %v203
        %316 = vmatprep.subr.mxu0 0.0
        %317 = vmatpush1.msra.mxu0 %v204
        %318 = vmatprep.subr.mxu0 0.0
        %319 = vmatpush1.msra.mxu0 %v205
        %320 = vmatprep.subr.mxu0 0.0
        %321 = vmatpush1.msra.mxu0 %v206
        %322 = vmatprep.subr.mxu0 0.0
        %323 = vmatpush1.msra.mxu0 %v207
        %324 = vmatprep.subr.mxu0 0.0
        %325 = vmatpush1.msra.mxu0 %v208
        %326 = vmatprep.subr.mxu0 0.0
        %327 = vmatpush1.msra.mxu0 %v209
        %328 = vmatprep.subr.mxu0 0.0
        %329 = vmatpush1.msra.mxu0 %v210
        %330 = vmatprep.subr.mxu0 0.0
        %331 = vmatpush1.msra.mxu0 %v211
        %332 = vmatprep.subr.mxu0 0.0
        %333 = vmatpush1.msra.mxu0 %v212
        %334 = vmatprep.subr.mxu0 0.0
        %335 = vmatpush1.msra.mxu0 %v213
        %336 = vmatprep.subr.mxu0 0.0
        %337 = vmatpush1.msra.mxu0 0.0
        %338 = vmatprep.subr.mxu0 0.0
        %339 = vmatpush1.msra.mxu0 0.0
        %340 = vmatprep.subr.mxu0 0.0
        %341 = vmatpush1.msra.mxu0 0.0
        %342 = vmatprep.subr.mxu0 0.0
        %343 = vmatpush1.msra.mxu0 0.0
        %344 = vmatprep.subr.mxu0 0.0
        %345 = vmatpush1.msra.mxu0 0.0
        %346 = vmatprep.subr.mxu0 0.0
        %347 = vmatpush1.msra.mxu0 0.0
        %348 = vmatprep.subr.mxu0 0.0
        %349 = vmatpush1.msra.mxu0 0.0
        %350 = vmatprep.subr.mxu0 0.0
        %351 = vmatpush1.msra.mxu0 0.0
        %352 = vmatprep.subr.mxu0 0.0
        %353 = vmatpush1.msra.mxu0 0.0
        %354 = vmatprep.subr.mxu0 0.0
        %355 = vmatpush1.msra.mxu0 0.0
        %356 = vmatprep.subr.mxu0 0.0
        %357 = vmatpush1.msra.mxu0 0.0
        %358 = vmatprep.subr.mxu0 0.0
        %359 = vmatpush1.msra.mxu0 0.0
        %360 = vmatprep.subr.mxu0 0.0
        %361 = vmatpush1.msra.mxu0 0.0
        %362 = vmatprep.subr.mxu0 0.0
        %363 = vmatpush1.msra.mxu0 0.0
        %364 = vmatprep.subr.mxu0 0.0
        %365 = vmatpush1.msra.mxu0 0.0
        %366 = vmatprep.subr.mxu0 0.0
        %367 = vmatpush1.msra.mxu0 0.0
        %368 = vmatprep.mubr.f32.mxu0 0.0
        %369 = vmatmul.mubr.f32.gmra.mrb[0].mxu0 %v197
        %v370 = vpop.f32.mrb[0].mxu0
        %v371 = vadd.f32 %v301, %v370
        %v372 = vpop.f32.mrb[0].mxu0
        %373 = vdwg.mxu0
        %s374 = sadd.s32 %s195, 2
        %s375 = scalar_lea.vmem [#allocation2], %s374
        %v376 = vld [vmem:[%s375] sm:$0xff]
        %s377 = scalar_lea.vmem [#allocation6], 256
        %v378 = vld [vmem:[%s377] sm:$0xff]
        %v379 = vld [vmem:[%s377 + $0x8] sm:$0xff]
        %v380 = vld [vmem:[%s377 + $0x10] sm:$0xff]
        %v381 = vld [vmem:[%s377 + $0x18] sm:$0xff]
        %v382 = vld [vmem:[%s377 + $0x20] sm:$0xff]
        %v383 = vld [vmem:[%s377 + $0x28] sm:$0xff]
        %v384 = vld [vmem:[%s377 + $0x30] sm:$0xff]
        %v385 = vld [vmem:[%s377 + $0x38] sm:$0xff]
        %v386 = vld [vmem:[%s377 + $0x40] sm:$0xff]
        %v387 = vld [vmem:[%s377 + $0x48] sm:$0xff]
        %v388 = vld [vmem:[%s377 + $0x50] sm:$0xff]
        %v389 = vld [vmem:[%s377 + $0x58] sm:$0xff]
        %v390 = vld [vmem:[%s377 + $0x60] sm:$0xff]
        %v391 = vld [vmem:[%s377 + $0x68] sm:$0xff]
        %v392 = vld [vmem:[%s377 + $0x70] sm:$0xff]
        %v393 = vld [vmem:[%s377 + $0x78] sm:$0xff]
        %394 = vmatprep.subr.mxu0 0.0
        %395 = vmatpush1.msra.mxu0 %v378
        %396 = vmatprep.subr.mxu0 0.0
        %397 = vmatpush1.msra.mxu0 %v379
        %398 = vmatprep.subr.mxu0 0.0
        %399 = vmatpush1.msra.mxu0 %v380
        %400 = vmatprep.subr.mxu0 0.0
        %401 = vmatpush1.msra.mxu0 %v381
        %402 = vmatprep.subr.mxu0 0.0
        %403 = vmatpush1.msra.mxu0 %v382
        %404 = vmatprep.subr.mxu0 0.0
        %405 = vmatpush1.msra.mxu0 %v383
        %406 = vmatprep.subr.mxu0 0.0
        %407 = vmatpush1.msra.mxu0 %v384
        %408 = vmatprep.subr.mxu0 0.0
        %409 = vmatpush1.msra.mxu0 %v385
        %410 = vmatprep.subr.mxu0 0.0
        %411 = vmatpush1.msra.mxu0 %v386
        %412 = vmatprep.subr.mxu0 0.0
        %413 = vmatpush1.msra.mxu0 %v387
        %414 = vmatprep.subr.mxu0 0.0
        %415 = vmatpush1.msra.mxu0 %v388
        %416 = vmatprep.subr.mxu0 0.0
        %417 = vmatpush1.msra.mxu0 %v389
        %418 = vmatprep.subr.mxu0 0.0
        %419 = vmatpush1.msra.mxu0 %v390
        %420 = vmatprep.subr.mxu0 0.0
        %421 = vmatpush1.msra.mxu0 %v391
        %422 = vmatprep.subr.mxu0 0.0
        %423 = vmatpush1.msra.mxu0 %v392
        %424 = vmatprep.subr.mxu0 0.0
        %425 = vmatpush1.msra.mxu0 %v393
        %426 = vmatprep.subr.mxu0 0.0
        %427 = vmatpush1.msra.mxu0 0.0
        %428 = vmatprep.subr.mxu0 0.0
        %429 = vmatpush1.msra.mxu0 0.0
        %430 = vmatprep.subr.mxu0 0.0
        %431 = vmatpush1.msra.mxu0 0.0
        %432 = vmatprep.subr.mxu0 0.0
        %433 = vmatpush1.msra.mxu0 0.0
        %434 = vmatprep.subr.mxu0 0.0
        %435 = vmatpush1.msra.mxu0 0.0
        %436 = vmatprep.subr.mxu0 0.0
        %437 = vmatpush1.msra.mxu0 0.0
        %438 = vmatprep.subr.mxu0 0.0
        %439 = vmatpush1.msra.mxu0 0.0
        %440 = vmatprep.subr.mxu0 0.0
        %441 = vmatpush1.msra.mxu0 0.0
        %442 = vmatprep.subr.mxu0 0.0
        %443 = vmatpush1.msra.mxu0 0.0
        %444 = vmatprep.subr.mxu0 0.0
        %445 = vmatpush1.msra.mxu0 0.0
        %446 = vmatprep.subr.mxu0 0.0
        %447 = vmatpush1.msra.mxu0 0.0
        %448 = vmatprep.subr.mxu0 0.0
        %449 = vmatpush1.msra.mxu0 0.0
        %450 = vmatprep.subr.mxu0 0.0
        %451 = vmatpush1.msra.mxu0 0.0
        %452 = vmatprep.subr.mxu0 0.0
        %453 = vmatpush1.msra.mxu0 0.0
        %454 = vmatprep.subr.mxu0 0.0
        %455 = vmatpush1.msra.mxu0 0.0
        %456 = vmatprep.subr.mxu0 0.0
        %457 = vmatpush1.msra.mxu0 0.0
        %458 = vmatprep.mubr.f32.mxu0 0.0
        %459 = vmatmul.mubr.f32.gmra.mrb[0].mxu0 %v376
        %v460 = vpop.f32.mrb[0].mxu0
        %v461 = vadd.f32 0.0, %v460
        %v462 = vpop.f32.mrb[0].mxu0
        %463 = vdwg.mxu0
        %v464 = vadd.f32 %v371, %v461
        %s465 = sadd.s32 %s195, 3
        %s466 = scalar_lea.vmem [#allocation2], %s465
        %v467 = vld [vmem:[%s466] sm:$0xff]
        %s468 = scalar_lea.vmem [#allocation6], 384
        %v469 = vld [vmem:[%s468] sm:$0xff]
        %v470 = vld [vmem:[%s468 + $0x8] sm:$0xff]
        %v471 = vld [vmem:[%s468 + $0x10] sm:$0xff]
        %v472 = vld [vmem:[%s468 + $0x18] sm:$0xff]
        %v473 = vld [vmem:[%s468 + $0x20] sm:$0xff]
        %v474 = vld [vmem:[%s468 + $0x28] sm:$0xff]
        %v475 = vld [vmem:[%s468 + $0x30] sm:$0xff]
        %v476 = vld [vmem:[%s468 + $0x38] sm:$0xff]
        %v477 = vld [vmem:[%s468 + $0x40] sm:$0xff]
        %v478 = vld [vmem:[%s468 + $0x48] sm:$0xff]
        %v479 = vld [vmem:[%s468 + $0x50] sm:$0xff]
        %v480 = vld [vmem:[%s468 + $0x58] sm:$0xff]
        %v481 = vld [vmem:[%s468 + $0x60] sm:$0xff]
        %v482 = vld [vmem:[%s468 + $0x68] sm:$0xff]
        %v483 = vld [vmem:[%s468 + $0x70] sm:$0xff]
        %v484 = vld [vmem:[%s468 + $0x78] sm:$0xff]
        %485 = vmatprep.subr.mxu0 0.0
        %486 = vmatpush1.msra.mxu0 %v469
        %487 = vmatprep.subr.mxu0 0.0
        %488 = vmatpush1.msra.mxu0 %v470
        %489 = vmatprep.subr.mxu0 0.0
        %490 = vmatpush1.msra.mxu0 %v471
        %491 = vmatprep.subr.mxu0 0.0
        %492 = vmatpush1.msra.mxu0 %v472
        %493 = vmatprep.subr.mxu0 0.0
        %494 = vmatpush1.msra.mxu0 %v473
        %495 = vmatprep.subr.mxu0 0.0
        %496 = vmatpush1.msra.mxu0 %v474
        %497 = vmatprep.subr.mxu0 0.0
        %498 = vmatpush1.msra.mxu0 %v475
        %499 = vmatprep.subr.mxu0 0.0
        %500 = vmatpush1.msra.mxu0 %v476
        %501 = vmatprep.subr.mxu0 0.0
        %502 = vmatpush1.msra.mxu0 %v477
        %503 = vmatprep.subr.mxu0 0.0
        %504 = vmatpush1.msra.mxu0 %v478
        %505 = vmatprep.subr.mxu0 0.0
        %506 = vmatpush1.msra.mxu0 %v479
        %507 = vmatprep.subr.mxu0 0.0
        %508 = vmatpush1.msra.mxu0 %v480
        %509 = vmatprep.subr.mxu0 0.0
        %510 = vmatpush1.msra.mxu0 %v481
        %511 = vmatprep.subr.mxu0 0.0
        %512 = vmatpush1.msra.mxu0 %v482
        %513 = vmatprep.subr.mxu0 0.0
        %514 = vmatpush1.msra.mxu0 %v483
        %515 = vmatprep.subr.mxu0 0.0
        %516 = vmatpush1.msra.mxu0 %v484
        %517 = vmatprep.subr.mxu0 0.0
        %518 = vmatpush1.msra.mxu0 0.0
        %519 = vmatprep.subr.mxu0 0.0
        %520 = vmatpush1.msra.mxu0 0.0
        %521 = vmatprep.subr.mxu0 0.0
        %522 = vmatpush1.msra.mxu0 0.0
        %523 = vmatprep.subr.mxu0 0.0
        %524 = vmatpush1.msra.mxu0 0.0
        %525 = vmatprep.subr.mxu0 0.0
        %526 = vmatpush1.msra.mxu0 0.0
        %527 = vmatprep.subr.mxu0 0.0
        %528 = vmatpush1.msra.mxu0 0.0
        %529 = vmatprep.subr.mxu0 0.0
        %530 = vmatpush1.msra.mxu0 0.0
        %531 = vmatprep.subr.mxu0 0.0
        %532 = vmatpush1.msra.mxu0 0.0
        %533 = vmatprep.subr.mxu0 0.0
        %534 = vmatpush1.msra.mxu0 0.0
        %535 = vmatprep.subr.mxu0 0.0
        %536 = vmatpush1.msra.mxu0 0.0
        %537 = vmatprep.subr.mxu0 0.0
        %538 = vmatpush1.msra.mxu0 0.0
        %539 = vmatprep.subr.mxu0 0.0
        %540 = vmatpush1.msra.mxu0 0.0
        %541 = vmatprep.subr.mxu0 0.0
        %542 = vmatpush1.msra.mxu0 0.0
        %543 = vmatprep.subr.mxu0 0.0
        %544 = vmatpush1.msra.mxu0 0.0
        %545 = vmatprep.subr.mxu0 0.0
        %546 = vmatpush1.msra.mxu0 0.0
        %547 = vmatprep.subr.mxu0 0.0
        %548 = vmatpush1.msra.mxu0 0.0
        %549 = vmatprep.mubr.f32.mxu0 0.0
        %550 = vmatmul.mubr.f32.gmra.mrb[0].mxu0 %v467
        %v551 = vpop.f32.mrb[0].mxu0
        %v552 = vadd.f32 0.0, %v551
        %v553 = vpop.f32.mrb[0].mxu0
        %554 = vdwg.mxu0
        %v555 = vadd.f32 %v464, %v552
        %s556 = sadd.s32 %s195, 4
        %s557 = scalar_lea.vmem [#allocation2], %s556
        %v558 = vld [vmem:[%s557] sm:$0xff]
        %s559 = scalar_lea.vmem [#allocation6], 512
        %v560 = vld [vmem:[%s559] sm:$0xff]
        %v561 = vld [vmem:[%s559 + $0x8] sm:$0xff]
        %v562 = vld [vmem:[%s559 + $0x10] sm:$0xff]
        %v563 = vld [vmem:[%s559 + $0x18] sm:$0xff]
        %v564 = vld [vmem:[%s559 + $0x20] sm:$0xff]
        %v565 = vld [vmem:[%s559 + $0x28] sm:$0xff]
        %v566 = vld [vmem:[%s559 + $0x30] sm:$0xff]
        %v567 = vld [vmem:[%s559 + $0x38] sm:$0xff]
        %v568 = vld [vmem:[%s559 + $0x40] sm:$0xff]
        %v569 = vld [vmem:[%s559 + $0x48] sm:$0xff]
        %v570 = vld [vmem:[%s559 + $0x50] sm:$0xff]
        %v571 = vld [vmem:[%s559 + $0x58] sm:$0xff]
        %v572 = vld [vmem:[%s559 + $0x60] sm:$0xff]
        %v573 = vld [vmem:[%s559 + $0x68] sm:$0xff]
        %v574 = vld [vmem:[%s559 + $0x70] sm:$0xff]
        %v575 = vld [vmem:[%s559 + $0x78] sm:$0xff]
        %576 = vmatprep.subr.mxu0 0.0
        %577 = vmatpush1.msra.mxu0 %v560
        %578 = vmatprep.subr.mxu0 0.0
        %579 = vmatpush1.msra.mxu0 %v561
        %580 = vmatprep.subr.mxu0 0.0
        %581 = vmatpush1.msra.mxu0 %v562
        %582 = vmatprep.subr.mxu0 0.0
        %583 = vmatpush1.msra.mxu0 %v563
        %584 = vmatprep.subr.mxu0 0.0
        %585 = vmatpush1.msra.mxu0 %v564
        %586 = vmatprep.subr.mxu0 0.0
        %587 = vmatpush1.msra.mxu0 %v565
        %588 = vmatprep.subr.mxu0 0.0
        %589 = vmatpush1.msra.mxu0 %v566
        %590 = vmatprep.subr.mxu0 0.0
        %591 = vmatpush1.msra.mxu0 %v567
        %592 = vmatprep.subr.mxu0 0.0
        %593 = vmatpush1.msra.mxu0 %v568
        %594 = vmatprep.subr.mxu0 0.0
        %595 = vmatpush1.msra.mxu0 %v569
        %596 = vmatprep.subr.mxu0 0.0
        %597 = vmatpush1.msra.mxu0 %v570
        %598 = vmatprep.subr.mxu0 0.0
        %599 = vmatpush1.msra.mxu0 %v571
        %600 = vmatprep.subr.mxu0 0.0
        %601 = vmatpush1.msra.mxu0 %v572
        %602 = vmatprep.subr.mxu0 0.0
        %603 = vmatpush1.msra.mxu0 %v573
        %604 = vmatprep.subr.mxu0 0.0
        %605 = vmatpush1.msra.mxu0 %v574
        %606 = vmatprep.subr.mxu0 0.0
        %607 = vmatpush1.msra.mxu0 %v575
        %608 = vmatprep.subr.mxu0 0.0
        %609 = vmatpush1.msra.mxu0 0.0
        %610 = vmatprep.subr.mxu0 0.0
        %611 = vmatpush1.msra.mxu0 0.0
        %612 = vmatprep.subr.mxu0 0.0
        %613 = vmatpush1.msra.mxu0 0.0
        %614 = vmatprep.subr.mxu0 0.0
        %615 = vmatpush1.msra.mxu0 0.0
        %616 = vmatprep.subr.mxu0 0.0
        %617 = vmatpush1.msra.mxu0 0.0
        %618 = vmatprep.subr.mxu0 0.0
        %619 = vmatpush1.msra.mxu0 0.0
        %620 = vmatprep.subr.mxu0 0.0
        %621 = vmatpush1.msra.mxu0 0.0
        %622 = vmatprep.subr.mxu0 0.0
        %623 = vmatpush1.msra.mxu0 0.0
        %624 = vmatprep.subr.mxu0 0.0
        %625 = vmatpush1.msra.mxu0 0.0
        %626 = vmatprep.subr.mxu0 0.0
        %627 = vmatpush1.msra.mxu0 0.0
        %628 = vmatprep.subr.mxu0 0.0
        %629 = vmatpush1.msra.mxu0 0.0
        %630 = vmatprep.subr.mxu0 0.0
        %631 = vmatpush1.msra.mxu0 0.0
        %632 = vmatprep.subr.mxu0 0.0
        %633 = vmatpush1.msra.mxu0 0.0
        %634 = vmatprep.subr.mxu0 0.0
        %635 = vmatpush1.msra.mxu0 0.0
        %636 = vmatprep.subr.mxu0 0.0
        %637 = vmatpush1.msra.mxu0 0.0
        %638 = vmatprep.subr.mxu0 0.0
        %639 = vmatpush1.msra.mxu0 0.0
        %640 = vmatprep.mubr.f32.mxu0 0.0
        %641 = vmatmul.mubr.f32.gmra.mrb[0].mxu0 %v558
        %v642 = vpop.f32.mrb[0].mxu0
        %v643 = vadd.f32 0.0, %v642
        %v644 = vpop.f32.mrb[0].mxu0
        %645 = vdwg.mxu0
        %v646 = vadd.f32 %v555, %v643
        %s647 = sadd.s32 %s195, 5
        %s648 = scalar_lea.vmem [#allocation2], %s647
        %v649 = vld [vmem:[%s648] sm:$0xff]
        %s650 = scalar_lea.vmem [#allocation6], 640
        %v651 = vld [vmem:[%s650] sm:$0xff]
        %v652 = vld [vmem:[%s650 + $0x8] sm:$0xff]
        %v653 = vld [vmem:[%s650 + $0x10] sm:$0xff]
        %v654 = vld [vmem:[%s650 + $0x18] sm:$0xff]
        %v655 = vld [vmem:[%s650 + $0x20] sm:$0xff]
        %v656 = vld [vmem:[%s650 + $0x28] sm:$0xff]
        %v657 = vld [vmem:[%s650 + $0x30] sm:$0xff]
        %v658 = vld [vmem:[%s650 + $0x38] sm:$0xff]
        %v659 = vld [vmem:[%s650 + $0x40] sm:$0xff]
        %v660 = vld [vmem:[%s650 + $0x48] sm:$0xff]
        %v661 = vld [vmem:[%s650 + $0x50] sm:$0xff]
        %v662 = vld [vmem:[%s650 + $0x58] sm:$0xff]
        %v663 = vld [vmem:[%s650 + $0x60] sm:$0xff]
        %v664 = vld [vmem:[%s650 + $0x68] sm:$0xff]
        %v665 = vld [vmem:[%s650 + $0x70] sm:$0xff]
        %v666 = vld [vmem:[%s650 + $0x78] sm:$0xff]
        %667 = vmatprep.subr.mxu0 0.0
        %668 = vmatpush1.msra.mxu0 %v651
        %669 = vmatprep.subr.mxu0 0.0
        %670 = vmatpush1.msra.mxu0 %v652
        %671 = vmatprep.subr.mxu0 0.0
        %672 = vmatpush1.msra.mxu0 %v653
        %673 = vmatprep.subr.mxu0 0.0
        %674 = vmatpush1.msra.mxu0 %v654
        %675 = vmatprep.subr.mxu0 0.0
        %676 = vmatpush1.msra.mxu0 %v655
        %677 = vmatprep.subr.mxu0 0.0
        %678 = vmatpush1.msra.mxu0 %v656
        %679 = vmatprep.subr.mxu0 0.0
        %680 = vmatpush1.msra.mxu0 %v657
        %681 = vmatprep.subr.mxu0 0.0
        %682 = vmatpush1.msra.mxu0 %v658
        %683 = vmatprep.subr.mxu0 0.0
        %684 = vmatpush1.msra.mxu0 %v659
        %685 = vmatprep.subr.mxu0 0.0
        %686 = vmatpush1.msra.mxu0 %v660
        %687 = vmatprep.subr.mxu0 0.0
        %688 = vmatpush1.msra.mxu0 %v661
        %689 = vmatprep.subr.mxu0 0.0
        %690 = vmatpush1.msra.mxu0 %v662
        %691 = vmatprep.subr.mxu0 0.0
        %692 = vmatpush1.msra.mxu0 %v663
        %693 = vmatprep.subr.mxu0 0.0
        %694 = vmatpush1.msra.mxu0 %v664
        %695 = vmatprep.subr.mxu0 0.0
        %696 = vmatpush1.msra.mxu0 %v665
        %697 = vmatprep.subr.mxu0 0.0
        %698 = vmatpush1.msra.mxu0 %v666
        %699 = vmatprep.subr.mxu0 0.0
        %700 = vmatpush1.msra.mxu0 0.0
        %701 = vmatprep.subr.mxu0 0.0
        %702 = vmatpush1.msra.mxu0 0.0
        %703 = vmatprep.subr.mxu0 0.0
        %704 = vmatpush1.msra.mxu0 0.0
        %705 = vmatprep.subr.mxu0 0.0
        %706 = vmatpush1.msra.mxu0 0.0
        %707 = vmatprep.subr.mxu0 0.0
        %708 = vmatpush1.msra.mxu0 0.0
        %709 = vmatprep.subr.mxu0 0.0
        %710 = vmatpush1.msra.mxu0 0.0
        %711 = vmatprep.subr.mxu0 0.0
        %712 = vmatpush1.msra.mxu0 0.0
        %713 = vmatprep.subr.mxu0 0.0
        %714 = vmatpush1.msra.mxu0 0.0
        %715 = vmatprep.subr.mxu0 0.0
        %716 = vmatpush1.msra.mxu0 0.0
        %717 = vmatprep.subr.mxu0 0.0
        %718 = vmatpush1.msra.mxu0 0.0
        %719 = vmatprep.subr.mxu0 0.0
        %720 = vmatpush1.msra.mxu0 0.0
        %721 = vmatprep.subr.mxu0 0.0
        %722 = vmatpush1.msra.mxu0 0.0
        %723 = vmatprep.subr.mxu0 0.0
        %724 = vmatpush1.msra.mxu0 0.0
        %725 = vmatprep.subr.mxu0 0.0
        %726 = vmatpush1.msra.mxu0 0.0
        %727 = vmatprep.subr.mxu0 0.0
        %728 = vmatpush1.msra.mxu0 0.0
        %729 = vmatprep.subr.mxu0 0.0
        %730 = vmatpush1.msra.mxu0 0.0
        %731 = vmatprep.mubr.f32.mxu0 0.0
        %732 = vmatmul.mubr.f32.gmra.mrb[0].mxu0 %v649
        %v733 = vpop.f32.mrb[0].mxu0
        %v734 = vadd.f32 0.0, %v733
        %v735 = vpop.f32.mrb[0].mxu0
        %736 = vdwg.mxu0
        %v737 = vadd.f32 %v646, %v734
        %s738 = sadd.s32 %s195, 6
        %s739 = scalar_lea.vmem [#allocation2], %s738
        %v740 = vld [vmem:[%s739] sm:$0xff]
        %s741 = scalar_lea.vmem [#allocation6], 768
        %v742 = vld [vmem:[%s741] sm:$0xff]
        %v743 = vld [vmem:[%s741 + $0x8] sm:$0xff]
        %v744 = vld [vmem:[%s741 + $0x10] sm:$0xff]
        %v745 = vld [vmem:[%s741 + $0x18] sm:$0xff]
        %v746 = vld [vmem:[%s741 + $0x20] sm:$0xff]
        %v747 = vld [vmem:[%s741 + $0x28] sm:$0xff]
        %v748 = vld [vmem:[%s741 + $0x30] sm:$0xff]
        %v749 = vld [vmem:[%s741 + $0x38] sm:$0xff]
        %v750 = vld [vmem:[%s741 + $0x40] sm:$0xff]
        %v751 = vld [vmem:[%s741 + $0x48] sm:$0xff]
        %v752 = vld [vmem:[%s741 + $0x50] sm:$0xff]
        %v753 = vld [vmem:[%s741 + $0x58] sm:$0xff]
        %v754 = vld [vmem:[%s741 + $0x60] sm:$0xff]
        %v755 = vld [vmem:[%s741 + $0x68] sm:$0xff]
        %v756 = vld [vmem:[%s741 + $0x70] sm:$0xff]
        %v757 = vld [vmem:[%s741 + $0x78] sm:$0xff]
        %758 = vmatprep.subr.mxu0 0.0
        %759 = vmatpush1.msra.mxu0 %v742
        %760 = vmatprep.subr.mxu0 0.0
        %761 = vmatpush1.msra.mxu0 %v743
        %762 = vmatprep.subr.mxu0 0.0
        %763 = vmatpush1.msra.mxu0 %v744
        %764 = vmatprep.subr.mxu0 0.0
        %765 = vmatpush1.msra.mxu0 %v745
        %766 = vmatprep.subr.mxu0 0.0
        %767 = vmatpush1.msra.mxu0 %v746
        %768 = vmatprep.subr.mxu0 0.0
        %769 = vmatpush1.msra.mxu0 %v747
        %770 = vmatprep.subr.mxu0 0.0
        %771 = vmatpush1.msra.mxu0 %v748
        %772 = vmatprep.subr.mxu0 0.0
        %773 = vmatpush1.msra.mxu0 %v749
        %774 = vmatprep.subr.mxu0 0.0
        %775 = vmatpush1.msra.mxu0 %v750
        %776 = vmatprep.subr.mxu0 0.0
        %777 = vmatpush1.msra.mxu0 %v751
        %778 = vmatprep.subr.mxu0 0.0
        %779 = vmatpush1.msra.mxu0 %v752
        %780 = vmatprep.subr.mxu0 0.0
        %781 = vmatpush1.msra.mxu0 %v753
        %782 = vmatprep.subr.mxu0 0.0
        %783 = vmatpush1.msra.mxu0 %v754
        %784 = vmatprep.subr.mxu0 0.0
        %785 = vmatpush1.msra.mxu0 %v755
        %786 = vmatprep.subr.mxu0 0.0
        %787 = vmatpush1.msra.mxu0 %v756
        %788 = vmatprep.subr.mxu0 0.0
        %789 = vmatpush1.msra.mxu0 %v757
        %790 = vmatprep.subr.mxu0 0.0
        %791 = vmatpush1.msra.mxu0 0.0
        %792 = vmatprep.subr.mxu0 0.0
        %793 = vmatpush1.msra.mxu0 0.0
        %794 = vmatprep.subr.mxu0 0.0
        %795 = vmatpush1.msra.mxu0 0.0
        %796 = vmatprep.subr.mxu0 0.0
        %797 = vmatpush1.msra.mxu0 0.0
        %798 = vmatprep.subr.mxu0 0.0
        %799 = vmatpush1.msra.mxu0 0.0
        %800 = vmatprep.subr.mxu0 0.0
        %801 = vmatpush1.msra.mxu0 0.0
        %802 = vmatprep.subr.mxu0 0.0
        %803 = vmatpush1.msra.mxu0 0.0
        %804 = vmatprep.subr.mxu0 0.0
        %805 = vmatpush1.msra.mxu0 0.0
        %806 = vmatprep.subr.mxu0 0.0
        %807 = vmatpush1.msra.mxu0 0.0
        %808 = vmatprep.subr.mxu0 0.0
        %809 = vmatpush1.msra.mxu0 0.0
        %810 = vmatprep.subr.mxu0 0.0
        %811 = vmatpush1.msra.mxu0 0.0
        %812 = vmatprep.subr.mxu0 0.0
        %813 = vmatpush1.msra.mxu0 0.0
        %814 = vmatprep.subr.mxu0 0.0
        %815 = vmatpush1.msra.mxu0 0.0
        %816 = vmatprep.subr.mxu0 0.0
        %817 = vmatpush1.msra.mxu0 0.0
        %818 = vmatprep.subr.mxu0 0.0
        %819 = vmatpush1.msra.mxu0 0.0
        %820 = vmatprep.subr.mxu0 0.0
        %821 = vmatpush1.msra.mxu0 0.0
        %822 = vmatprep.mubr.f32.mxu0 0.0
        %823 = vmatmul.mubr.f32.gmra.mrb[0].mxu0 %v740
        %v824 = vpop.f32.mrb[0].mxu0
        %v825 = vadd.f32 0.0, %v824
        %v826 = vpop.f32.mrb[0].mxu0
        %827 = vdwg.mxu0
        %v828 = vadd.f32 %v737, %v825
        %v829 = vld [vmem:[%s2] sm:$0x1]
        %v831 = vlaneseq
        %v832 = vshrl.u32 %v831, 7
        %v833 = vsub.s32 0, %v832
        %v834 = vrot.slane %v829, %v833
        %v836 = vadd.f32 %v828, %v834
        %837 = vst [vmem:[%s178] sm:$0xff] %v836
        %s838 = sand.u32 %s90, 1
        %s839 = scalar_lea.sflag [#allocation5], %s838
        %s840 = sand.u32 %s90, 1
        %s841 = smul.addr %s840, 8
        %s842 = scalar_lea.vmem [#allocation8], %s841
        // Predicated region
        $region41: #{tpu_custom_call.1} parent=31 // pred_check
          %p843 = pneg %p100
        $region42: #{tpu_custom_call.1} parent=31 // pred_check_branch
          %845 = sbr.rel (%p843) target = $region44
        $region43: #{tpu_custom_call.1} parent=31 // pred_region
          %s847 = ssub.s32 128, 128
          %848 = vsyncadd %s839, %s847
          %s849 = smul.addr %s19, 128
          %s850 = scalar_lea.hbm %s3, %s849
          %s852 = sshll.u32 %s842, 4
          %s853 = int_to_ptr.vmem [resolvable:$true] %s852
          %855 = dma.vmem_to_hbm [thread:$0]  %s853, 128, %s850, %s839
        $region44: #{tpu_custom_call.1} parent=31 // pred_fallthru
          _
      $region32: #{tpu_custom_call.1} parent=5 // pred_fallthru
        _
      %p856 = scmp.le.s32.totalorder 2, %s14
      // Predicated region
      $region45: #{tpu_custom_call.1} parent=5 // pred_check
        %p857 = pneg %p856
      $region46: #{tpu_custom_call.1} parent=5 // pred_check_branch
        %859 = sbr.rel (%p857) target = $region48
      $region47: #{tpu_custom_call.1} parent=5 // pred_region
        %s860 = ssub.s32 %s14, 2
        // Predicated region
        $region49: #{tpu_custom_call.1} parent=47 // pred_check
          %p861 = pneg %p106
        $region50: #{tpu_custom_call.1} parent=47 // pred_check_branch
          %863 = sbr.rel (%p861) target = $region52
        $region51: #{tpu_custom_call.1} parent=47 // pred_region
          %s864 = sand.u32 %s91, 1
          %s865 = scalar_lea.sflag [#allocation5], %s864
          %s866 = sand.u32 %s91, 1
          %s867 = smul.addr %s866, 8
          %s868 = scalar_lea.vmem [#allocation8], %s867
          %869 = dma.done %s865, 128
        $region52: #{tpu_custom_call.1} parent=47 // pred_fallthru
          _
      $region48: #{tpu_custom_call.1} parent=5 // pred_fallthru
        _
    $region6: #{tpu_custom_call.1} parent=1 // loop_footer
      %s18 = sadd.s32 1, %s14
    $region7: #{tpu_custom_call.1} parent=1 // loop_footer_branch
      %13 = sbr.rel target = $region3
    $region8: #{tpu_custom_call.1} parent=1 // loop_exit
      _
    %870 = vsyncpa [#allocation4], 1
    %s871 = scalar_lea.sflag [#allocation4], 1
    %872 = vsyncpa %s871, 1
    %873 = vsyncpa [#allocation7], 1
    %874 = vsyncpa [#allocation5], 1
    %s875 = scalar_lea.sflag [#allocation5], 1
    %876 = vsyncpa %s875, 1

</llo_original>
